<compile_context>
chip_gen: v7x
topology: tpu7x:2x2x1
jax: 0.10.0
libtpu: 0.0.40
codegen_flags: <defaults>
</compile_context>

<pallas_src>
import jax
import jax.numpy as jnp
from jax.experimental import pallas as pl
from jax.experimental.pallas import tpu as pltpu


def _tv_kernel(x_ref, hacc_ref, wacc_ref):
    # x_ref:    (TB, H, W)      input tile (TB images)
    # hacc_ref: (1, H-1, W)     resident f32 accumulator (per parallel split)
    # wacc_ref: (1, H, W-1)     resident f32 accumulator (per parallel split)
    @pl.when(pl.program_id(1) == 0)
    def _():
        hacc_ref[...] = jnp.zeros_like(hacc_ref)
        wacc_ref[...] = jnp.zeros_like(wacc_ref)

    x = x_ref[...].astype(jnp.float32)            # (TB, H, W)
    dh = x[:, 1:, :] - x[:, :-1, :]               # (TB, H-1, W)
    dw = x[:, :, 1:] - x[:, :, :-1]               # (TB, H, W-1)
    # Reduce only over the leading (image) axis -> pure VPU adds, no per-step
    # cross-lane/sublane (XLU) reduction and no scalar RMW.
    hacc_ref[...] += jnp.sum(dh * dh, axis=0, keepdims=True)
    wacc_ref[...] += jnp.sum(dw * dw, axis=0, keepdims=True)


def _pick_tb(n_slices, h, w, target_bytes=1 << 20):
    """Largest divisor of n_slices whose (TB, H, W) f32 tile fits target_bytes."""
    best = 1
    for tb in range(1, n_slices + 1):
        if n_slices % tb == 0 and tb * h * w * 4 <= target_bytes:
            best = tb
    return best


def tv_loss(x, tv_weight):
    """Total variation loss, semantics identical to the PyTorch TVLoss.forward."""
    b, c, h, w = x.shape
    n = b * c
    x_flat = x.reshape(n, h, w)

    tb = _pick_tb(n, h, w)
    num_blocks = n // tb
    # 2-way split of the work for megacore (v7x) when it divides evenly;
    # each split accumulates into its own output slice (partial sums).
    split = 2 if (num_blocks >= 2 and num_blocks % 2 == 0) else 1
    steps = num_blocks // split

    hacc, wacc = pl.pallas_call(
        _tv_kernel,
        out_shape=(
            jax.ShapeDtypeStruct((split, h - 1, w), jnp.float32),
            jax.ShapeDtypeStruct((split, h, w - 1), jnp.float32),
        ),
        grid_spec=pltpu.PrefetchScalarGridSpec(
            num_scalar_prefetch=0,
            grid=(split, steps),
            in_specs=[
                pl.BlockSpec((tb, h, w), lambda s, i: (s * steps + i, 0, 0)),
            ],
            out_specs=[
                pl.BlockSpec((1, h - 1, w), lambda s, i: (s, 0, 0)),
                pl.BlockSpec((1, h, w - 1), lambda s, i: (s, 0, 0)),
            ],
        ),
        compiler_params=pltpu.CompilerParams(
            dimension_semantics=("parallel", "arbitrary"),
        ),
    )(x_flat)

    # Single final cross-lane reduction on tiny arrays + scalar math in JAX.
    h_tv = jnp.sum(hacc)
    w_tv = jnp.sum(wacc)
    count_h = c * (h - 1) * w   # _tensor_size(x[:, :, 1:, :])
    count_w = c * h * (w - 1)   # _tensor_size(x[:, :, :, 1:])
    return tv_weight * 2.0 * (h_tv / count_h + w_tv / count_w) / b


def tv_loss_ref(x, tv_weight):
    """Plain-JAX reference for verification."""
    b, c, h, w = x.shape
    count_h = c * (h - 1) * w
    count_w = c * h * (w - 1)
    h_tv = jnp.sum((x[:, :, 1:, :] - x[:, :, :-1, :]) ** 2)
    w_tv = jnp.sum((x[:, :, :, 1:] - x[:, :, :, :-1]) ** 2)
    return tv_weight * 2.0 * (h_tv / count_h + w_tv / count_w) / b


if __name__ == "__main__":
    key = jax.random.PRNGKey(0)
    B, C, H, W = 2, 4, 16, 16
    x = jax.random.normal(key, (B, C, H, W), dtype=jnp.float32)
    tv_weight = 0.5

    out = tv_loss(x, tv_weight)
    out = jax.block_until_ready(out)

    ref = tv_loss_ref(x, tv_weight)
    assert jnp.allclose(out, ref, rtol=1e-5, atol=1e-5), (out, ref)
    print("KERNEL_OK")
</pallas_src>

<mosaic_0001>
module attributes {stable_mosaic.version = 11 : i64} {
  func.func @_tv_kernel(%arg0: i32, %arg1: i32, %arg2: memref<8x16x16xf32, #tpu.memory_space<vmem>>, %arg3: memref<1x15x16xf32, #tpu.memory_space<vmem>>, %arg4: memref<1x16x15xf32, #tpu.memory_space<vmem>>) attributes {dimension_semantics = [#tpu.dimension_semantics<parallel>, #tpu.dimension_semantics<arbitrary>], iteration_bounds = array<i64: 1, 1>, scalar_prefetch = 0 : i64, scratch_operands = 0 : i64, tpu.core_type = #tpu.core_type<tc>, window_params = [{transform_indices = @transform_0, window_bounds = array<i64: 8, 16, 16>}, {transform_indices = @transform_1, window_bounds = array<i64: 1, 15, 16>}, {transform_indices = @transform_2, window_bounds = array<i64: 1, 16, 15>}]} {
    %c0_i32 = arith.constant 0 : i32
    %0 = arith.cmpi eq, %arg1, %c0_i32 : i32
    %1 = arith.extui %0 : i1 to i32
    %c0_i32_0 = arith.constant 0 : i32
    %2 = arith.cmpi ne, %1, %c0_i32_0 : i32
    scf.if %2 {
      %cst_16 = arith.constant 0.000000e+00 : f32
      %22 = vector.broadcast %cst_16 : f32 to vector<1x15x16xf32>
      %c0_17 = arith.constant 0 : index
      %c0_18 = arith.constant 0 : index
      %c0_19 = arith.constant 0 : index
      %23 = vector.load %arg3[%c0_17, %c0_18, %c0_19] : memref<1x15x16xf32, #tpu.memory_space<vmem>>, vector<1x15x16xf32>
      tpu.vector_store %arg3[%c0_17, %c0_18, %c0_19], %22 {strides = array<i32>} : memref<1x15x16xf32, #tpu.memory_space<vmem>>, vector<1x15x16xf32>,
      %cst_20 = arith.constant 0.000000e+00 : f32
      %24 = vector.broadcast %cst_20 : f32 to vector<1x16x15xf32>
      %c0_21 = arith.constant 0 : index
      %c0_22 = arith.constant 0 : index
      %c0_23 = arith.constant 0 : index
      %25 = vector.load %arg4[%c0_21, %c0_22, %c0_23] : memref<1x16x15xf32, #tpu.memory_space<vmem>>, vector<1x16x15xf32>
      tpu.vector_store %arg4[%c0_21, %c0_22, %c0_23], %24 {strides = array<i32>} : memref<1x16x15xf32, #tpu.memory_space<vmem>>, vector<1x16x15xf32>,
    } else {
    }
    %c0 = arith.constant 0 : index
    %c0_1 = arith.constant 0 : index
    %c0_2 = arith.constant 0 : index
    %3 = vector.load %arg2[%c0, %c0_1, %c0_2] : memref<8x16x16xf32, #tpu.memory_space<vmem>>, vector<8x16x16xf32>
    %4 = vector.extract_strided_slice %3 {offsets = [0, 1, 0], sizes = [8, 15, 16], strides = [1, 1, 1]} : vector<8x16x16xf32> to vector<8x15x16xf32>
    %5 = vector.extract_strided_slice %3 {offsets = [0, 0, 0], sizes = [8, 15, 16], strides = [1, 1, 1]} : vector<8x16x16xf32> to vector<8x15x16xf32>
    %6 = arith.subf %4, %5 : vector<8x15x16xf32>
    %7 = vector.extract_strided_slice %3 {offsets = [0, 0, 1], sizes = [8, 16, 15], strides = [1, 1, 1]} : vector<8x16x16xf32> to vector<8x16x15xf32>
    %8 = vector.extract_strided_slice %3 {offsets = [0, 0, 0], sizes = [8, 16, 15], strides = [1, 1, 1]} : vector<8x16x16xf32> to vector<8x16x15xf32>
    %9 = arith.subf %7, %8 : vector<8x16x15xf32>
    %c0_3 = arith.constant 0 : index
    %c0_4 = arith.constant 0 : index
    %c0_5 = arith.constant 0 : index
    %10 = vector.load %arg3[%c0_3, %c0_4, %c0_5] : memref<1x15x16xf32, #tpu.memory_space<vmem>>, vector<1x15x16xf32>
    %11 = arith.mulf %6, %6 : vector<8x15x16xf32>
    %cst = arith.constant dense<0.000000e+00> : vector<15x16xf32>
    %12 = vector.multi_reduction <add>, %11, %cst [0] : vector<8x15x16xf32> to vector<15x16xf32>
    %13 = vector.shape_cast %12 : vector<15x16xf32> to vector<1x15x16xf32>
    %14 = arith.addf %10, %13 : vector<1x15x16xf32>
    %c0_6 = arith.constant 0 : index
    %c0_7 = arith.constant 0 : index
    %c0_8 = arith.constant 0 : index
    %15 = vector.load %arg3[%c0_6, %c0_7, %c0_8] : memref<1x15x16xf32, #tpu.memory_space<vmem>>, vector<1x15x16xf32>
    tpu.vector_store %arg3[%c0_6, %c0_7, %c0_8], %14 {strides = array<i32>} : memref<1x15x16xf32, #tpu.memory_space<vmem>>, vector<1x15x16xf32>,
    %c0_9 = arith.constant 0 : index
    %c0_10 = arith.constant 0 : index
    %c0_11 = arith.constant 0 : index
    %16 = vector.load %arg4[%c0_9, %c0_10, %c0_11] : memref<1x16x15xf32, #tpu.memory_space<vmem>>, vector<1x16x15xf32>
    %17 = arith.mulf %9, %9 : vector<8x16x15xf32>
    %cst_12 = arith.constant dense<0.000000e+00> : vector<16x15xf32>
    %18 = vector.multi_reduction <add>, %17, %cst_12 [0] : vector<8x16x15xf32> to vector<16x15xf32>
    %19 = vector.shape_cast %18 : vector<16x15xf32> to vector<1x16x15xf32>
    %20 = arith.addf %16, %19 : vector<1x16x15xf32>
    %c0_13 = arith.constant 0 : index
    %c0_14 = arith.constant 0 : index
    %c0_15 = arith.constant 0 : index
    %21 = vector.load %arg4[%c0_13, %c0_14, %c0_15] : memref<1x16x15xf32, #tpu.memory_space<vmem>>, vector<1x16x15xf32>
    tpu.vector_store %arg4[%c0_13, %c0_14, %c0_15], %20 {strides = array<i32>} : memref<1x16x15xf32, #tpu.memory_space<vmem>>, vector<1x16x15xf32>,
    return
  }
  func.func @transform_0(%arg0: i32, %arg1: i32) -> (i32, i32, i32) {
    %c1_i32 = arith.constant 1 : i32
    %0 = arith.muli %arg0, %c1_i32 : i32
    %1 = arith.addi %0, %arg1 : i32
    %c0_i32 = arith.constant 0 : i32
    %c0_i32_0 = arith.constant 0 : i32
    %c0_i32_1 = arith.constant 0 : i32
    return %1, %c0_i32, %c0_i32_0 : i32, i32, i32
  }
  func.func @transform_1(%arg0: i32, %arg1: i32) -> (i32, i32, i32) {
    %c0_i32 = arith.constant 0 : i32
    %c0_i32_0 = arith.constant 0 : i32
    %c0_i32_1 = arith.constant 0 : i32
    return %arg0, %c0_i32, %c0_i32_0 : i32, i32, i32
  }
  func.func @transform_2(%arg0: i32, %arg1: i32) -> (i32, i32, i32) {
    %c0_i32 = arith.constant 0 : i32
    %c0_i32_0 = arith.constant 0 : i32
    %c0_i32_1 = arith.constant 0 : i32
    return %arg0, %c0_i32, %c0_i32_0 : i32, i32, i32
  }
}

</mosaic_0001>

<llo_original>
// kernel: tpu_custom_call.1
$region0: #{tpu_custom_call.1}
  #allocation0 [shape = 'u32[]', space=smem, size = 0x4, offset = 0x4, fixed_abs, tag = 'smem constant byte address 0x4 - core index']
  #allocation1 [shape = 'u32[144,128]{1,0:T(1,128)}', space=vmem, size = 0x12000, scoped, tag = 'internal scratch']
  %s0 = inlined_call_operand.hbm [shape: f32[8,16,16], index: 0, kind: input, shape index: {}]
  %s1 = inlined_call_operand.vmem [shape: f32[1,15,16], index: 1, kind: output, shape index: {0}]
  %s2 = inlined_call_operand.vmem [shape: f32[1,16,15], index: 2, kind: output, shape index: {1}]
  %3 = xla_tuple %s1, %s2
  %s4 = sld [smem:[#allocation0]]
  $region30: #{tpu_custom_call.1} parent=0
    _
  %s6 = ssub.s32 1, %s4
  %s7 = scalar_select 0, %s6, %s4
  $region1: #{tpu_custom_call.1} parent=0
    #allocation2 [shape = 'u8[65536]{0}', space=vmem, size = 0x10000, scoped, tag = 'input window, operand 0, single buffered']
    #allocation3 [shape = 's32[1]{0}', space=sflag, size = 0x4, scoped, tag = 'scoped memory for tpu_custom_call.1']
    %8 = vsyncpa [#allocation3], 0
    // Predicated region
    $region2: #{tpu_custom_call.1} parent=1 // pred_check
      _
    $region3: #{tpu_custom_call.1} parent=1 // pred_check_branch
      %10 = sbr.rel (0) target = $region5
    $region4: #{tpu_custom_call.1} parent=1 // pred_region
      %s11 = sadd.s32 0, 0
      %s12 = smul.u32 8, %s11
      %s14 = ssub.s32 2048, 2048
      %15 = vsyncadd [#allocation3], %s14
      %s16 = smul.addr %s12, 2
      %s17 = smul.addr %s16, 128
      %s18 = scalar_lea.hbm %s0, %s17
      %s19 = sshll.u32 [#allocation2], 4
      %s20 = int_to_ptr.vmem [resolvable:$true] %s19
      %25 = dma.hbm_to_vmem [thread:$0]  %s18, 2048, %s20, [#allocation3], 128, 128, 8
    $region5: #{tpu_custom_call.1} parent=1 // pred_fallthru
      _
    // Predicated region
    $region6: #{tpu_custom_call.1} parent=1 // pred_check
      _
    $region7: #{tpu_custom_call.1} parent=1 // pred_check_branch
      %27 = sbr.rel (0) target = $region9
    $region8: #{tpu_custom_call.1} parent=1 // pred_region
      %28 = dma.done [#allocation3], 2048
    $region9: #{tpu_custom_call.1} parent=1 // pred_fallthru
      _
    %s29 = sadd.s32 0, 0
    %s30 = smul.u32 8, %s29
    %p31 = scmp.eq.s32.totalorder 0, 0
    // Predicated region
    $region10: #{tpu_custom_call.1} parent=1 // pred_check
      %p32 = pneg %p31
    $region11: #{tpu_custom_call.1} parent=1 // pred_check_branch
      %34 = sbr.rel (%p32) target = $region13
    $region12: #{tpu_custom_call.1} parent=1 // pred_region
      %vm35 = vcmask 130048
      %36 = vst.msk [vmem:[%s1] sm:$0xff] %vm35, 0.0
      %vm37 = vcmask 129024
      %38 = vst.msk [vmem:[%s1 + $0x8] sm:$0x7f] %vm37, 0.0
      %vm39 = vcmask 121856
      %40 = vst.msk [vmem:[%s2] sm:$0xff] %vm39, 0.0
      %41 = vst.msk [vmem:[%s2 + $0x8] sm:$0xff] %vm39, 0.0
    $region13: #{tpu_custom_call.1} parent=1 // pred_fallthru
      _
    %v42 = vld [vmem:[#allocation2] sm:$0xff]
    %v43 = vld [vmem:[#allocation2 + $0x8] sm:$0xff]
    %v44 = vld [vmem:[#allocation2 + $0x10] sm:$0xff]
    %v45 = vld [vmem:[#allocation2 + $0x18] sm:$0xff]
    %v46 = vld [vmem:[#allocation2 + $0x20] sm:$0xff]
    %v47 = vld [vmem:[#allocation2 + $0x28] sm:$0xff]
    %v48 = vld [vmem:[#allocation2 + $0x30] sm:$0xff]
    %v49 = vld [vmem:[#allocation2 + $0x38] sm:$0xff]
    %v50 = vld [vmem:[#allocation2 + $0x40] sm:$0xff]
    %v51 = vld [vmem:[#allocation2 + $0x48] sm:$0xff]
    %v52 = vld [vmem:[#allocation2 + $0x50] sm:$0xff]
    %v53 = vld [vmem:[#allocation2 + $0x58] sm:$0xff]
    %v54 = vld [vmem:[#allocation2 + $0x60] sm:$0xff]
    %v55 = vld [vmem:[#allocation2 + $0x68] sm:$0xff]
    %v56 = vld [vmem:[#allocation2 + $0x70] sm:$0xff]
    %v57 = vld [vmem:[#allocation2 + $0x78] sm:$0xff]
    %vm74 = vcmask 1040384
    %v75 = vrot.slane %v42, 7
    %v76 = vrot.slane %v43, 7
    %v77 = vsel %vm74, %v75, %v76
    %v78 = vrot.slane %v44, 7
    %v79 = vrot.slane %v45, 7
    %v80 = vsel %vm74, %v78, %v79
    %v81 = vrot.slane %v46, 7
    %v82 = vrot.slane %v47, 7
    %v83 = vsel %vm74, %v81, %v82
    %v84 = vrot.slane %v48, 7
    %v85 = vrot.slane %v49, 7
    %v86 = vsel %vm74, %v84, %v85
    %v87 = vrot.slane %v50, 7
    %v88 = vrot.slane %v51, 7
    %v89 = vsel %vm74, %v87, %v88
    %v90 = vrot.slane %v52, 7
    %v91 = vrot.slane %v53, 7
    %v92 = vsel %vm74, %v90, %v91
    %v93 = vrot.slane %v54, 7
    %v94 = vrot.slane %v55, 7
    %v95 = vsel %vm74, %v93, %v94
    %v96 = vrot.slane %v56, 7
    %v97 = vrot.slane %v57, 7
    %v98 = vsel %vm74, %v96, %v97
    %v115 = vsub.f32 %v42, %v75
    %v116 = vsub.f32 %v43, %v77
    %v117 = vsub.f32 %v44, %v78
    %v118 = vsub.f32 %v45, %v80
    %v119 = vsub.f32 %v46, %v81
    %v120 = vsub.f32 %v47, %v83
    %v121 = vsub.f32 %v48, %v84
    %v122 = vsub.f32 %v49, %v86
    %v123 = vsub.f32 %v50, %v87
    %v124 = vsub.f32 %v51, %v89
    %v125 = vsub.f32 %v52, %v90
    %v126 = vsub.f32 %v53, %v92
    %v127 = vsub.f32 %v54, %v93
    %v128 = vsub.f32 %v55, %v95
    %v129 = vsub.f32 %v56, %v96
    %v130 = vsub.f32 %v57, %v98
    %131 = vrot.lane.b32.xlu0 %v42, 1
    %v132 = vpop.permute.xlu0 %131
    %133 = vrot.lane.b32.xlu0 %v43, 1
    %v134 = vpop.permute.xlu0 %133
    %135 = vrot.lane.b32.xlu0 %v44, 1
    %v136 = vpop.permute.xlu0 %135
    %137 = vrot.lane.b32.xlu0 %v45, 1
    %v138 = vpop.permute.xlu0 %137
    %139 = vrot.lane.b32.xlu0 %v46, 1
    %v140 = vpop.permute.xlu0 %139
    %141 = vrot.lane.b32.xlu0 %v47, 1
    %v142 = vpop.permute.xlu0 %141
    %143 = vrot.lane.b32.xlu0 %v48, 1
    %v144 = vpop.permute.xlu0 %143
    %145 = vrot.lane.b32.xlu0 %v49, 1
    %v146 = vpop.permute.xlu0 %145
    %147 = vrot.lane.b32.xlu0 %v50, 1
    %v148 = vpop.permute.xlu0 %147
    %149 = vrot.lane.b32.xlu0 %v51, 1
    %v150 = vpop.permute.xlu0 %149
    %151 = vrot.lane.b32.xlu0 %v52, 1
    %v152 = vpop.permute.xlu0 %151
    %153 = vrot.lane.b32.xlu0 %v53, 1
    %v154 = vpop.permute.xlu0 %153
    %155 = vrot.lane.b32.xlu0 %v54, 1
    %v156 = vpop.permute.xlu0 %155
    %157 = vrot.lane.b32.xlu0 %v55, 1
    %v158 = vpop.permute.xlu0 %157
    %159 = vrot.lane.b32.xlu0 %v56, 1
    %v160 = vpop.permute.xlu0 %159
    %161 = vrot.lane.b32.xlu0 %v57, 1
    %v162 = vpop.permute.xlu0 %161
    %v179 = vsub.f32 %v42, %v132
    %v180 = vsub.f32 %v43, %v134
    %v181 = vsub.f32 %v44, %v136
    %v182 = vsub.f32 %v45, %v138
    %v183 = vsub.f32 %v46, %v140
    %v184 = vsub.f32 %v47, %v142
    %v185 = vsub.f32 %v48, %v144
    %v186 = vsub.f32 %v49, %v146
    %v187 = vsub.f32 %v50, %v148
    %v188 = vsub.f32 %v51, %v150
    %v189 = vsub.f32 %v52, %v152
    %v190 = vsub.f32 %v53, %v154
    %v191 = vsub.f32 %v54, %v156
    %v192 = vsub.f32 %v55, %v158
    %v193 = vsub.f32 %v56, %v160
    %v194 = vsub.f32 %v57, %v162
    %v195 = vld [vmem:[%s1] sm:$0xff]
    %v196 = vld [vmem:[%s1 + $0x8] sm:$0x7f]
    %v197 = vmul.f32 %v115, %v115
    %v198 = vmul.f32 %v116, %v116
    %v199 = vmul.f32 %v117, %v117
    %v200 = vmul.f32 %v118, %v118
    %v201 = vmul.f32 %v119, %v119
    %v202 = vmul.f32 %v120, %v120
    %v203 = vmul.f32 %v121, %v121
    %v204 = vmul.f32 %v122, %v122
    %v205 = vmul.f32 %v123, %v123
    %v206 = vmul.f32 %v124, %v124
    %v207 = vmul.f32 %v125, %v125
    %v208 = vmul.f32 %v126, %v126
    %v209 = vmul.f32 %v127, %v127
    %v210 = vmul.f32 %v128, %v128
    %v211 = vmul.f32 %v129, %v129
    %v212 = vmul.f32 %v130, %v130
    %vm213 = vcmask 130049
    %v214 = vsel %vm213, %v197, 0.0
    %v215 = vsel %vm213, %v199, 0.0
    %v216 = vadd.f32 %v214, %v215
    %v217 = vsel %vm213, %v201, 0.0
    %v218 = vadd.f32 %v216, %v217
    %v219 = vsel %vm213, %v203, 0.0
    %v220 = vadd.f32 %v218, %v219
    %v221 = vsel %vm213, %v205, 0.0
    %v222 = vadd.f32 %v220, %v221
    %v223 = vsel %vm213, %v207, 0.0
    %v224 = vadd.f32 %v222, %v223
    %v225 = vsel %vm213, %v209, 0.0
    %v226 = vadd.f32 %v224, %v225
    %v227 = vsel %vm213, %v211, 0.0
    %v228 = vadd.f32 %v226, %v227
    %vm229 = vcmask 130048
    %v230 = vsel %vm229, %v198, 0.0
    %v231 = vsel %vm229, %v200, 0.0
    %v232 = vadd.f32 %v230, %v231
    %v233 = vsel %vm229, %v202, 0.0
    %v234 = vadd.f32 %v232, %v233
    %v235 = vsel %vm229, %v204, 0.0
    %v236 = vadd.f32 %v234, %v235
    %v237 = vsel %vm229, %v206, 0.0
    %v238 = vadd.f32 %v236, %v237
    %v239 = vsel %vm229, %v208, 0.0
    %v240 = vadd.f32 %v238, %v239
    %v241 = vsel %vm229, %v210, 0.0
    %v242 = vadd.f32 %v240, %v241
    %v243 = vsel %vm229, %v212, 0.0
    %v244 = vadd.f32 %v242, %v243
    %vm247 = vcmask 1046528
    %v248 = vrot.slane %v228, 1
    %v249 = vrot.slane %v244, 1
    %v250 = vsel %vm247, %v248, %v249
    %v253 = vadd.f32 %v195, %v250
    %v254 = vadd.f32 %v196, %v249
    %255 = vst.msk [vmem:[%s1] sm:$0xff] %vm229, %v253
    %vm256 = vcmask 129024
    %257 = vst.msk [vmem:[%s1 + $0x8] sm:$0x7f] %vm256, %v254
    %v258 = vld [vmem:[%s2] sm:$0xff]
    %v259 = vld [vmem:[%s2 + $0x8] sm:$0xff]
    %v260 = vmul.f32 %v179, %v179
    %v261 = vmul.f32 %v180, %v180
    %v262 = vmul.f32 %v181, %v181
    %v263 = vmul.f32 %v182, %v182
    %v264 = vmul.f32 %v183, %v183
    %v265 = vmul.f32 %v184, %v184
    %v266 = vmul.f32 %v185, %v185
    %v267 = vmul.f32 %v186, %v186
    %v268 = vmul.f32 %v187, %v187
    %v269 = vmul.f32 %v188, %v188
    %v270 = vmul.f32 %v189, %v189
    %v271 = vmul.f32 %v190, %v190
    %v272 = vmul.f32 %v191, %v191
    %v273 = vmul.f32 %v192, %v192
    %v274 = vmul.f32 %v193, %v193
    %v275 = vmul.f32 %v194, %v194
    %vm276 = vcmask 130056
    %v277 = vsel %vm276, %v260, 0.0
    %v278 = vsel %vm276, %v262, 0.0
    %v279 = vadd.f32 %v277, %v278
    %v280 = vsel %vm276, %v264, 0.0
    %v281 = vadd.f32 %v279, %v280
    %v282 = vsel %vm276, %v266, 0.0
    %v283 = vadd.f32 %v281, %v282
    %v284 = vsel %vm276, %v268, 0.0
    %v285 = vadd.f32 %v283, %v284
    %v286 = vsel %vm276, %v270, 0.0
    %v287 = vadd.f32 %v285, %v286
    %v288 = vsel %vm276, %v272, 0.0
    %v289 = vadd.f32 %v287, %v288
    %v290 = vsel %vm276, %v274, 0.0
    %v291 = vadd.f32 %v289, %v290
    %v292 = vsel %vm276, %v261, 0.0
    %v293 = vsel %vm276, %v263, 0.0
    %v294 = vadd.f32 %v292, %v293
    %v295 = vsel %vm276, %v265, 0.0
    %v296 = vadd.f32 %v294, %v295
    %v297 = vsel %vm276, %v267, 0.0
    %v298 = vadd.f32 %v296, %v297
    %v299 = vsel %vm276, %v269, 0.0
    %v300 = vadd.f32 %v298, %v299
    %v301 = vsel %vm276, %v271, 0.0
    %v302 = vadd.f32 %v300, %v301
    %v303 = vsel %vm276, %v273, 0.0
    %v304 = vadd.f32 %v302, %v303
    %v305 = vsel %vm276, %v275, 0.0
    %v306 = vadd.f32 %v304, %v305
    %309 = vrot.lane.b32.xlu0 %v291, 127
    %v310 = vpop.permute.xlu0 %309
    %311 = vrot.lane.b32.xlu0 %v306, 127
    %v312 = vpop.permute.xlu0 %311
    %v315 = vadd.f32 %v258, %v310
    %v316 = vadd.f32 %v259, %v312
    %vm317 = vcmask 121856
    %318 = vst.msk [vmem:[%s2] sm:$0xff] %vm317, %v315
    %319 = vst.msk [vmem:[%s2 + $0x8] sm:$0xff] %vm317, %v316
    // Predicated region
    $region14: #{tpu_custom_call.1} parent=1 // pred_check
      _
    $region15: #{tpu_custom_call.1} parent=1 // pred_check_branch
      %321 = sbr.rel (0) target = $region17
    $region16: #{tpu_custom_call.1} parent=1 // pred_region
      _
    $region17: #{tpu_custom_call.1} parent=1 // pred_fallthru
      _
    // Predicated region
    $region18: #{tpu_custom_call.1} parent=1 // pred_check
      _
    $region19: #{tpu_custom_call.1} parent=1 // pred_check_branch
      %323 = sbr.rel (0) target = $region21
    $region20: #{tpu_custom_call.1} parent=1 // pred_region
      _
    $region21: #{tpu_custom_call.1} parent=1 // pred_fallthru
      _
    // Predicated region
    $region22: #{tpu_custom_call.1} parent=1 // pred_check
      _
    $region23: #{tpu_custom_call.1} parent=1 // pred_check_branch
      %325 = sbr.rel (0) target = $region25
    $region24: #{tpu_custom_call.1} parent=1 // pred_region
      _
    $region25: #{tpu_custom_call.1} parent=1 // pred_fallthru
      _
    // Predicated region
    $region26: #{tpu_custom_call.1} parent=1 // pred_check
      _
    $region27: #{tpu_custom_call.1} parent=1 // pred_check_branch
      %327 = sbr.rel (0) target = $region29
    $region28: #{tpu_custom_call.1} parent=1 // pred_region
      _
    $region29: #{tpu_custom_call.1} parent=1 // pred_fallthru
      _
    %328 = vsyncpa [#allocation3], 1

</llo_original>
